<compile_context>
chip_gen: v7x
topology: tpu7x:2x2x1
jax: 0.10.0
libtpu: 0.0.40
codegen_flags: <defaults>
</compile_context>

<pallas_src>
import jax
import jax.numpy as jnp
from jax import lax
from jax.experimental import pallas as pl
from jax.experimental.pallas import tpu as pltpu


def _round_up(v: int, m: int) -> int:
    return (v + m - 1) // m * m


def _make_linear_mse_kernel(tm: int, tn: int, n_batch: int, n_out: int,
                            m_pad: int, n_pad: int):
    """Tiled kernel body. Grid = (M/tm, N/tn, K/tk); K is the reduction axis."""
    mask_rows = m_pad > n_batch   # static: padding exists along M
    mask_cols = n_pad > n_out     # static: padding exists along N

    def kernel(x_ref, w_ref, b_ref, y_ref, out_ref, loss_ref):
        # Hoisted grid queries (pl.program_id inside a pl.when body is not
        # lowerable on the interpret path).
        m = pl.program_id(0)
        n = pl.program_id(1)
        k = pl.program_id(2)
        nk = pl.num_programs(2)

        # The f32 output block is resident across the K axis (index_map
        # ignores k), so it doubles as the accumulator: zero it on k == 0.
        @pl.when(k == 0)
        def _init():
            out_ref[...] = jnp.zeros_like(out_ref)

        # bf16 x tile (tm, tk) contracted with bf16 W tile (tn, tk) along K,
        # f32 accumulation on the MXU. Contracting dim 1 vs dim 1 is the
        # trans_b lowering, so no W.T copy is ever materialized in HBM.
        # (Perf-review note: verify via the bundle dump that this does not
        # emit a per-K-step vxpose of the weight tile on the target chip.)
        out_ref[...] += lax.dot_general(
            x_ref[...], w_ref[...],
            dimension_numbers=(((1,), (1,)), ((), ())),
            preferred_element_type=jnp.float32)

        # Epilogue on the last K step: bias add, lane-dense f32 output store,
        # and this tile's (optionally masked) partial SSE to SMEM.
        @pl.when(k == nk - 1)
        def _finalize():
            out = out_ref[...] + b_ref[...]        # (tm, tn) + (1, tn), f32
            out_ref[...] = out

            diff = out - y_ref[...]
            sq = diff * diff
            # Static specialization: only build the mask for axes that carry
            # padding (padded W/b/y columns are zero but padded x *rows*
            # would otherwise contribute `bias` to the diff).
            if mask_rows or mask_cols:
                valid = None
                if mask_rows:
                    row = m * tm + lax.broadcasted_iota(jnp.int32, (tm, tn), 0)
                    valid = row < n_batch
                if mask_cols:
                    col = n * tn + lax.broadcasted_iota(jnp.int32, (tm, tn), 1)
                    cvalid = col < n_out
                    valid = cvalid if valid is None else jnp.logical_and(valid, cvalid)
                sq = jnp.where(valid, sq, jnp.float32(0.0))
            # Cross-lane reduce (XLU) -> scalar partial sum into SMEM.
            loss_ref[0, 0] = jnp.sum(sq)

    return kernel


def linear_mode_forward(x, weight, bias, y):
    """Pallas equivalent of LinearMode.forward.

    Args:
      x:      (batch, in_features)          float32
      weight: (out_features, in_features)   float32 (PyTorch nn.Linear layout)
      bias:   (out_features,)               float32
      y:      (batch, out_features)         float32
    Returns:
      (output, loss): output (batch, out_features) f32, loss scalar f32.
    """
    batch, in_features = x.shape
    out_features = weight.shape[0]

    # ---- Per-generation VMEM budget ------------------------------------
    # Probe the chip; fall back to the smallest (v7x, 64 MiB/TC) when the
    # probe is unavailable (e.g. interpret mode on CPU).
    vmem_cap = 64 << 20
    try:
        info = pltpu.get_tpu_info()
        vmem_cap = int(getattr(info, "vmem_capacity_bytes", vmem_cap))
    except Exception:
        pass
    vmem_cap = max(32 << 20, min(vmem_cap, 128 << 20))

    if vmem_cap >= (128 << 20):            # v5e / v6e: 128 MiB VMEM
        tm_cap, tn_cap, tk_cap = 512, 1024, 2048
        vmem_limit = 100 << 20
    else:                                  # v7x (64 MiB/TC) or unknown
        tm_cap, tn_cap, tk_cap = 512, 512, 2048
        vmem_limit = 48 << 20

    # ---- Tile / padding selection --------------------------------------
    # M (batch): sublane-aligned.
    if batch <= tm_cap:
        tm = _round_up(batch, 8)
        m_pad = tm
    else:
        tm = tm_cap
        m_pad = _round_up(batch, tm)

    # K (in_features): lane-aligned (zero padding is semantically required
    # here, since padded K elements feed the MXU).
    k_pad = _round_up(in_features, 128)
    tk = k_pad if k_pad <= tk_cap else tk_cap
    k_pad = _round_up(k_pad, tk)

    # N (out_features): lane-aligned so output stores are full-width vst.
    n_pad = _round_up(out_features, 128)
    tn = n_pad if n_pad <= tn_cap else tn_cap
    n_pad = _round_up(n_pad, tn)

    grid_m = m_pad // tm
    grid_n = n_pad // tn
    grid_k = k_pad // tk

    # Megacore (v7x): a 1x1 parallel grid leaves one TensorCore idle; split N
    # when possible so both cores get a block.
    if grid_m == 1 and grid_n == 1 and tn >= 256 and tn % 256 == 0:
        tn //= 2
        grid_n = n_pad // tn

    f32 = jnp.float32
    bf16 = jnp.bfloat16

    def _pad2(a, r, c):
        return jnp.pad(a, ((0, r), (0, c))) if (r or c) else a

    # bf16 MXU operands (the cast makes the copy anyway, so any needed M/N/K
    # padding piggy-backs on it); bias / target stay f32. Zero-width pads are
    # skipped entirely.
    x_p = _pad2(x.astype(bf16), m_pad - batch, k_pad - in_features)
    w_p = _pad2(weight.astype(bf16), n_pad - out_features, k_pad - in_features)
    b_p = bias.astype(f32)
    if n_pad > out_features:
        b_p = jnp.pad(b_p, (0, n_pad - out_features))
    b_p = b_p.reshape(1, n_pad)
    y_p = _pad2(y.astype(f32), m_pad - batch, n_pad - out_features)

    kernel = _make_linear_mse_kernel(tm, tn, batch, out_features, m_pad, n_pad)

    grid_spec = pltpu.PrefetchScalarGridSpec(
        num_scalar_prefetch=0,
        grid=(grid_m, grid_n, grid_k),
        in_specs=[
            pl.BlockSpec((tm, tk), lambda m, n, k: (m, k)),   # x (bf16)
            pl.BlockSpec((tn, tk), lambda m, n, k: (n, k)),   # W (bf16, (out,in))
            pl.BlockSpec((1, tn), lambda m, n, k: (0, n)),    # bias (f32)
            pl.BlockSpec((tm, tn), lambda m, n, k: (m, n)),   # y target (f32)
        ],
        out_specs=(
            pl.BlockSpec((tm, tn), lambda m, n, k: (m, n)),   # output (f32, acc)
            pl.BlockSpec((1, 1), lambda m, n, k: (m, n),      # per-tile SSE
                         memory_space=pltpu.MemorySpace.SMEM),
        ),
    )

    # Advisory cost estimate, accounting for re-streaming: x is read grid_n
    # times, W grid_m times; y read once, output written once.
    flops = 2 * m_pad * n_pad * k_pad + 4 * m_pad * n_pad
    bytes_accessed = (
        2 * m_pad * k_pad * grid_n      # x (bf16), re-streamed per N block
        + 2 * n_pad * k_pad * grid_m    # W (bf16), re-streamed per M block
        + 4 * n_pad * grid_m            # bias (f32)
        + 4 * m_pad * n_pad             # y read (f32)
        + 4 * m_pad * n_pad             # output write (f32)
        + 4 * grid_m * grid_n)          # loss partials

    out_p, loss_part = pl.pallas_call(
        kernel,
        out_shape=(
            jax.ShapeDtypeStruct((m_pad, n_pad), jnp.float32),
            jax.ShapeDtypeStruct((grid_m, grid_n), jnp.float32),
        ),
        grid_spec=grid_spec,
        compiler_params=pltpu.CompilerParams(
            # Loss partials are per-(m, n) tile, so M and N shard cleanly
            # across v7x's two TensorCores; only K is a serial reduction.
            dimension_semantics=("parallel", "parallel", "arbitrary"),
            vmem_limit_bytes=vmem_limit,
        ),
        cost_estimate=pl.CostEstimate(
            flops=flops, transcendentals=0, bytes_accessed=bytes_accessed),
    )(x_p, w_p, b_p, y_p)

    output = out_p[:batch, :out_features]
    # Final scalar mean over the *real* (unpadded) element count; per-tile
    # partial sums were already masked in-kernel where padding exists.
    loss = jnp.sum(loss_part) * (1.0 / float(batch * out_features))
    return output, loss


if __name__ == "__main__":
    # Small shapes consistent with the module's forward: a plain Linear on a
    # (batch, in_features) tensor with a matching (batch, out_features) target.
    batch, in_features, out_features = 8, 32, 16

    key = jax.random.PRNGKey(0)
    k_x, k_y, k_w, k_b = jax.random.split(key, 4)

    x = jax.random.normal(k_x, (batch, in_features), dtype=jnp.float32)
    y = jax.random.normal(k_y, (batch, out_features), dtype=jnp.float32)

    # Deterministic nn.Linear-style init: U(-1/sqrt(in), 1/sqrt(in)).
    bound = 1.0 / (in_features ** 0.5)
    weight = jax.random.uniform(
        k_w, (out_features, in_features), jnp.float32, -bound, bound)
    bias = jax.random.uniform(
        k_b, (out_features,), jnp.float32, -bound, bound)

    fwd = jax.jit(linear_mode_forward)
    output, loss = fwd(x, weight, bias, y)
    jax.block_until_ready((output, loss))

    # Reference check (plain JAX, f32). Tolerances loosened because the MXU
    # operands are bf16 (accumulation stays f32).
    ref_out = x @ weight.T + bias
    ref_loss = jnp.mean((ref_out - y) ** 2)
    assert output.shape == ref_out.shape
    assert jnp.allclose(output, ref_out, atol=3e-2, rtol=3e-2)
    assert jnp.allclose(loss, ref_loss, atol=3e-2, rtol=3e-2)

    # TODO(synk): the module's one-time logger.info of tensor sizes is a host
    # side effect with no kernel equivalent; it is intentionally omitted.
    print("KERNEL_OK")
</pallas_src>

<mosaic_0001>
module attributes {stable_mosaic.version = 11 : i64} {
  func.func @kernel(%arg0: i32, %arg1: i32, %arg2: i32, %arg3: memref<8x128xbf16, #tpu.memory_space<vmem>>, %arg4: memref<128x128xbf16, #tpu.memory_space<vmem>>, %arg5: memref<1x128xf32, #tpu.memory_space<vmem>>, %arg6: memref<8x128xf32, #tpu.memory_space<vmem>>, %arg7: memref<8x128xf32, #tpu.memory_space<vmem>>, %arg8: memref<1x1xf32, #tpu.memory_space<smem>>) attributes {dimension_semantics = [#tpu.dimension_semantics<parallel>, #tpu.dimension_semantics<parallel>, #tpu.dimension_semantics<arbitrary>], iteration_bounds = array<i64: 1, 1, 1>, scalar_prefetch = 0 : i64, scratch_operands = 0 : i64, tpu.core_type = #tpu.core_type<tc>, window_params = [{transform_indices = @transform_0, window_bounds = array<i64: 8, 128>}, {transform_indices = @transform_1, window_bounds = array<i64: 128, 128>}, {transform_indices = @transform_2, window_bounds = array<i64: 1, 128>}, {transform_indices = @transform_3, window_bounds = array<i64: 8, 128>}, {transform_indices = @transform_4, window_bounds = array<i64: 8, 128>}, {transform_indices = @transform_5, window_bounds = array<i64: 1, 1>}]} {
    %c0_i32 = arith.constant 0 : i32
    %0 = arith.cmpi eq, %arg2, %c0_i32 : i32
    %1 = arith.extui %0 : i1 to i32
    %c0_i32_0 = arith.constant 0 : i32
    %2 = arith.cmpi ne, %1, %c0_i32_0 : i32
    scf.if %2 {
      %cst_10 = arith.constant 0.000000e+00 : f32
      %12 = vector.broadcast %cst_10 : f32 to vector<8x128xf32>
      %c0_11 = arith.constant 0 : index
      %c0_12 = arith.constant 0 : index
      %13 = vector.load %arg7[%c0_11, %c0_12] : memref<8x128xf32, #tpu.memory_space<vmem>>, vector<8x128xf32>
      tpu.vector_store %arg7[%c0_11, %c0_12], %12 {strides = array<i32>} : memref<8x128xf32, #tpu.memory_space<vmem>>, vector<8x128xf32>,
    } else {
    }
    %c0 = arith.constant 0 : index
    %c0_1 = arith.constant 0 : index
    %3 = vector.load %arg7[%c0, %c0_1] : memref<8x128xf32, #tpu.memory_space<vmem>>, vector<8x128xf32>
    %c0_2 = arith.constant 0 : index
    %c0_3 = arith.constant 0 : index
    %4 = vector.load %arg3[%c0_2, %c0_3] : memref<8x128xbf16, #tpu.memory_space<vmem>>, vector<8x128xbf16>
    %c0_4 = arith.constant 0 : index
    %c0_5 = arith.constant 0 : index
    %5 = vector.load %arg4[%c0_4, %c0_5] : memref<128x128xbf16, #tpu.memory_space<vmem>>, vector<128x128xbf16>
    %cst = arith.constant dense<0.000000e+00> : vector<8x128xf32>
    %6 = tpu.matmul %4, %5, %cst {dimension_numbers = #tpu.dot_dimension_numbers<[1], [1], [0], [0], [0, 0, 1, 0], [], []>} : vector<8x128xbf16>, vector<128x128xbf16>, vector<8x128xf32> -> vector<8x128xf32>
    %7 = arith.addf %3, %6 : vector<8x128xf32>
    %c0_6 = arith.constant 0 : index
    %c0_7 = arith.constant 0 : index
    %8 = vector.load %arg7[%c0_6, %c0_7] : memref<8x128xf32, #tpu.memory_space<vmem>>, vector<8x128xf32>
    tpu.vector_store %arg7[%c0_6, %c0_7], %7 {strides = array<i32>} : memref<8x128xf32, #tpu.memory_space<vmem>>, vector<8x128xf32>,
    %c0_i32_8 = arith.constant 0 : i32
    %9 = arith.cmpi eq, %arg2, %c0_i32_8 : i32
    %10 = arith.extui %9 : i1 to i32
    %c0_i32_9 = arith.constant 0 : i32
    %11 = arith.cmpi ne, %10, %c0_i32_9 : i32
    scf.if %11 {
      %c0_10 = arith.constant 0 : index
      %c0_11 = arith.constant 0 : index
      %12 = vector.load %arg7[%c0_10, %c0_11] : memref<8x128xf32, #tpu.memory_space<vmem>>, vector<8x128xf32>
      %c0_12 = arith.constant 0 : index
      %c0_13 = arith.constant 0 : index
      %13 = vector.load %arg5[%c0_12, %c0_13] : memref<1x128xf32, #tpu.memory_space<vmem>>, vector<1x128xf32>
      %14 = vector.broadcast %13 : vector<1x128xf32> to vector<8x128xf32>
      %15 = arith.addf %12, %14 : vector<8x128xf32>
      %c0_14 = arith.constant 0 : index
      %c0_15 = arith.constant 0 : index
      %16 = vector.load %arg7[%c0_14, %c0_15] : memref<8x128xf32, #tpu.memory_space<vmem>>, vector<8x128xf32>
      tpu.vector_store %arg7[%c0_14, %c0_15], %15 {strides = array<i32>} : memref<8x128xf32, #tpu.memory_space<vmem>>, vector<8x128xf32>,
      %c0_16 = arith.constant 0 : index
      %c0_17 = arith.constant 0 : index
      %17 = vector.load %arg6[%c0_16, %c0_17] : memref<8x128xf32, #tpu.memory_space<vmem>>, vector<8x128xf32>
      %18 = arith.subf %15, %17 : vector<8x128xf32>
      %19 = arith.mulf %18, %18 : vector<8x128xf32>
      %c128_i32 = arith.constant 128 : i32
      %20 = arith.muli %arg1, %c128_i32 : i32
      %21 = tpu.iota {dimensions = array<i32: 1>} : vector<8x128xi32>
      %22 = vector.broadcast %20 : i32 to vector<8x128xi32>
      %23 = arith.addi %22, %21 : vector<8x128xi32>
      %c16_i32 = arith.constant 16 : i32
      %24 = vector.broadcast %c16_i32 : i32 to vector<8x128xi32>
      %25 = arith.cmpi slt, %23, %24 : vector<8x128xi32>
      %cst_18 = arith.constant 0.000000e+00 : f32
      %26 = vector.broadcast %cst_18 : f32 to vector<8x128xf32>
      %27 = arith.select %25, %19, %26 : vector<8x128xi1>, vector<8x128xf32>
      %28 = vector.shape_cast %27 : vector<8x128xf32> to vector<1x8x128xf32>
      %cst_19 = arith.constant dense<0.000000e+00> : vector<1xf32>
      %29 = vector.multi_reduction <add>, %28, %cst_19 [1, 2] : vector<1x8x128xf32> to vector<1xf32>
      %30 = vector.shape_cast %29 : vector<1xf32> to vector<1x1x1xf32>
      %31 = vector.extract %30[0, 0, 0] : f32 from vector<1x1x1xf32>
      %c0_20 = arith.constant 0 : index
      %c0_21 = arith.constant 0 : index
      %32 = memref.load %arg8[%c0_20, %c0_21] : memref<1x1xf32, #tpu.memory_space<smem>>
      memref.store %31, %arg8[%c0_20, %c0_21] : memref<1x1xf32, #tpu.memory_space<smem>>
    } else {
    }
    return
  }
  func.func @transform_0(%arg0: i32, %arg1: i32, %arg2: i32) -> (i32, i32) {
    %c0_i32 = arith.constant 0 : i32
    return %arg0, %arg2 : i32, i32
  }
  func.func @transform_1(%arg0: i32, %arg1: i32, %arg2: i32) -> (i32, i32) {
    %c0_i32 = arith.constant 0 : i32
    return %arg1, %arg2 : i32, i32
  }
  func.func @transform_2(%arg0: i32, %arg1: i32, %arg2: i32) -> (i32, i32) {
    %c0_i32 = arith.constant 0 : i32
    %c0_i32_0 = arith.constant 0 : i32
    return %c0_i32, %arg1 : i32, i32
  }
  func.func @transform_3(%arg0: i32, %arg1: i32, %arg2: i32) -> (i32, i32) {
    %c0_i32 = arith.constant 0 : i32
    return %arg0, %arg1 : i32, i32
  }
  func.func @transform_4(%arg0: i32, %arg1: i32, %arg2: i32) -> (i32, i32) {
    %c0_i32 = arith.constant 0 : i32
    return %arg0, %arg1 : i32, i32
  }
  func.func @transform_5(%arg0: i32, %arg1: i32, %arg2: i32) -> (i32, i32) {
    %c0_i32 = arith.constant 0 : i32
    return %arg0, %arg1 : i32, i32
  }
}

</mosaic_0001>

<llo_original>
// kernel: linear_mode_forward.1
$region0: #{linear_mode_forward.1}
  #allocation0 [shape = 'u32[]', space=smem, size = 0x4, offset = 0x4, fixed_abs, tag = 'smem constant byte address 0x4 - core index']
  #allocation1 [shape = 'u32[144,128]{1,0:T(1,128)}', space=vmem, size = 0x12000, scoped, tag = 'internal scratch']
  %s0 = inlined_call_operand.vmem [shape: bf16[8,128], index: 0, kind: input, shape index: {}]
  %s1 = inlined_call_operand.vmem [shape: bf16[128,128], index: 1, kind: input, shape index: {}]
  %s2 = inlined_call_operand.vmem [shape: f32[1,128], index: 2, kind: input, shape index: {}]
  %s3 = inlined_call_operand.vmem [shape: f32[8,128], index: 3, kind: input, shape index: {}]
  %s4 = inlined_call_operand.hbm [shape: f32[8,128], index: 4, kind: output, shape index: {0}]
  %s5 = inlined_call_operand.hbm [shape: f32[1,1], index: 5, kind: output, shape index: {1}]
  %6 = xla_tuple %s4, %s5
  %s7 = sld [smem:[#allocation0]]
  $region42: #{linear_mode_forward.1} parent=0
    _
  %s9 = ssub.s32 1, %s7
  %s10 = scalar_select 0, %s9, %s7
  $region1: #{linear_mode_forward.1} parent=0
    #allocation2 [shape = 'u8[4096]{0}', space=vmem, size = 0x1000, scoped, tag = 'output window, operand 0, single buffered']
    #allocation3 [shape = 's32[1]{0}', space=sflag, size = 0x4, scoped, tag = 'scoped memory for linear_mode_forward.1']
    #allocation4 [shape = 's32[1]{0}', space=sflag, size = 0x4, scoped, tag = 'scoped memory for linear_mode_forward.1']
    #allocation5 [shape = 'u8[512]{0}', space=smem, size = 0x200, scoped, tag = 'output window, operand 1, single buffered']
    %11 = vsyncpa [#allocation3], 0
    %12 = vsyncpa [#allocation4], 0
    // Predicated region
    $region2: #{linear_mode_forward.1} parent=1 // pred_check
      _
    $region3: #{linear_mode_forward.1} parent=1 // pred_check_branch
      %14 = sbr.rel (0) target = $region5
    $region4: #{linear_mode_forward.1} parent=1 // pred_region
      _
    $region5: #{linear_mode_forward.1} parent=1 // pred_fallthru
      _
    // Predicated region
    $region6: #{linear_mode_forward.1} parent=1 // pred_check
      _
    $region7: #{linear_mode_forward.1} parent=1 // pred_check_branch
      %16 = sbr.rel (0) target = $region9
    $region8: #{linear_mode_forward.1} parent=1 // pred_region
      _
    $region9: #{linear_mode_forward.1} parent=1 // pred_fallthru
      _
    // Predicated region
    $region10: #{linear_mode_forward.1} parent=1 // pred_check
      _
    $region11: #{linear_mode_forward.1} parent=1 // pred_check_branch
      %18 = sbr.rel (0) target = $region13
    $region12: #{linear_mode_forward.1} parent=1 // pred_region
      _
    $region13: #{linear_mode_forward.1} parent=1 // pred_fallthru
      _
    // Predicated region
    $region14: #{linear_mode_forward.1} parent=1 // pred_check
      _
    $region15: #{linear_mode_forward.1} parent=1 // pred_check_branch
      %20 = sbr.rel (0) target = $region17
    $region16: #{linear_mode_forward.1} parent=1 // pred_region
      _
    $region17: #{linear_mode_forward.1} parent=1 // pred_fallthru
      _
    %p22 = scmp.eq.s32.totalorder 0, 0
    // Predicated region
    $region18: #{linear_mode_forward.1} parent=1 // pred_check
      %p23 = pneg %p22
    $region19: #{linear_mode_forward.1} parent=1 // pred_check_branch
      %25 = sbr.rel (%p23) target = $region21
    $region20: #{linear_mode_forward.1} parent=1 // pred_region
      %26 = vst [vmem:[#allocation2] sm:$0xff] 0.0
    $region21: #{linear_mode_forward.1} parent=1 // pred_fallthru
      _
    %v27 = vld [vmem:[#allocation2] sm:$0xff]
    %v28 = vld [vmem:[%s0] sm:$0xf]
    %v29 = vld [vmem:[%s1] sm:$0xf]
    %v30 = vld [vmem:[%s1 + $0x4] sm:$0xf]
    %v31 = vld [vmem:[%s1 + $0x8] sm:$0xf]
    %v32 = vld [vmem:[%s1 + $0xc] sm:$0xf]
    %v33 = vld [vmem:[%s1 + $0x10] sm:$0xf]
    %v34 = vld [vmem:[%s1 + $0x14] sm:$0xf]
    %v35 = vld [vmem:[%s1 + $0x18] sm:$0xf]
    %v36 = vld [vmem:[%s1 + $0x1c] sm:$0xf]
    %v37 = vld [vmem:[%s1 + $0x20] sm:$0xf]
    %v38 = vld [vmem:[%s1 + $0x24] sm:$0xf]
    %v39 = vld [vmem:[%s1 + $0x28] sm:$0xf]
    %v40 = vld [vmem:[%s1 + $0x2c] sm:$0xf]
    %v41 = vld [vmem:[%s1 + $0x30] sm:$0xf]
    %v42 = vld [vmem:[%s1 + $0x34] sm:$0xf]
    %v43 = vld [vmem:[%s1 + $0x38] sm:$0xf]
    %v44 = vld [vmem:[%s1 + $0x3c] sm:$0xf]
    %v61 = vunpack.c.l.b16 %v29
    %v62 = vunpack.c.l.b16 %v30
    %v63 = vunpack.c.l.b16 %v31
    %v64 = vunpack.c.l.b16 %v32
    %v65 = vunpack.c.l.b16 %v33
    %v66 = vunpack.c.l.b16 %v34
    %v67 = vunpack.c.l.b16 %v35
    %v68 = vunpack.c.l.b16 %v36
    %v69 = vunpack.c.l.b16 %v37
    %v70 = vunpack.c.l.b16 %v38
    %v71 = vunpack.c.l.b16 %v39
    %v72 = vunpack.c.l.b16 %v40
    %v73 = vunpack.c.l.b16 %v41
    %v74 = vunpack.c.l.b16 %v42
    %v75 = vunpack.c.l.b16 %v43
    %v76 = vunpack.c.l.b16 %v44
    %v77 = vpack.c.b16 %v62, %v61
    %v78 = vpack.c.b16 %v64, %v63
    %v79 = vpack.c.b16 %v66, %v65
    %v80 = vpack.c.b16 %v68, %v67
    %v81 = vpack.c.b16 %v70, %v69
    %v82 = vpack.c.b16 %v72, %v71
    %v83 = vpack.c.b16 %v74, %v73
    %v84 = vpack.c.b16 %v76, %v75
    %93 = vmatprep.subr.bf16.mxu0 0
    %94 = vmatpush1.bf16.xpose.msra.mxu0 %v77
    %95 = vmatprep.subr.bf16.mxu0 0
    %96 = vmatpush1.bf16.xpose.msra.mxu0 %v78
    %97 = vmatprep.subr.bf16.mxu0 0
    %98 = vmatpush1.bf16.xpose.msra.mxu0 %v79
    %99 = vmatprep.subr.bf16.mxu0 0
    %100 = vmatpush1.bf16.xpose.msra.mxu0 %v80
    %101 = vmatprep.subr.bf16.mxu0 0
    %102 = vmatpush1.bf16.xpose.msra.mxu0 %v81
    %103 = vmatprep.subr.bf16.mxu0 0
    %104 = vmatpush1.bf16.xpose.msra.mxu0 %v82
    %105 = vmatprep.subr.bf16.mxu0 0
    %106 = vmatpush1.bf16.xpose.msra.mxu0 %v83
    %107 = vmatprep.subr.bf16.mxu0 0
    %108 = vmatpush1.bf16.xpose.msra.mxu0 %v84
    %109 = vmatprep.subr.bf16.mxu0 0
    %110 = vmatpush1.bf16.xpose.msra.mxu0 0
    %111 = vmatprep.subr.bf16.mxu0 0
    %112 = vmatpush1.bf16.xpose.msra.mxu0 0
    %113 = vmatprep.subr.bf16.mxu0 0
    %114 = vmatpush1.bf16.xpose.msra.mxu0 0
    %115 = vmatprep.subr.bf16.mxu0 0
    %116 = vmatpush1.bf16.xpose.msra.mxu0 0
    %117 = vmatprep.subr.bf16.mxu0 0
    %118 = vmatpush1.bf16.xpose.msra.mxu0 0
    %119 = vmatprep.subr.bf16.mxu0 0
    %120 = vmatpush1.bf16.xpose.msra.mxu0 0
    %121 = vmatprep.subr.bf16.mxu0 0
    %122 = vmatpush1.bf16.xpose.msra.mxu0 0
    %123 = vmatprep.subr.bf16.mxu0 0
    %124 = vmatpush1.bf16.xpose.msra.mxu0 0
    %125 = vmatprep.mubr.bf16.mxu0 0
    %126 = vmatmul.mubr.bf16.gmra.mrb[0].mxu0 %v28
    %v127 = vpop.f32.mrb[0].mxu0
    %v128 = vadd.f32 0.0, %v127
    %v129 = vpop.f32.mrb[0].mxu0
    %v130 = vpop.f32.mrb[0].mxu0
    %v131 = vpop.f32.mrb[0].mxu0
    %132 = vdwg.mxu0
    %v133 = vadd.f32 %v27, %v128
    %134 = vst [vmem:[#allocation2] sm:$0xff] %v133
    // Predicated region
    $region22: #{linear_mode_forward.1} parent=1 // pred_check
      %p135 = pneg %p22
    $region23: #{linear_mode_forward.1} parent=1 // pred_check_branch
      %137 = sbr.rel (%p135) target = $region25
    $region24: #{linear_mode_forward.1} parent=1 // pred_region
      %v138 = vld [vmem:[#allocation2] sm:$0xff]
      %v139 = vld [vmem:[%s2] sm:$0x1]
      %v141 = vlaneseq
      %v142 = vshrl.u32 %v141, 7
      %v143 = vsub.s32 0, %v142
      %v144 = vrot.slane %v139, %v143
      %v146 = vadd.f32 %v138, %v144
      %147 = vst [vmem:[#allocation2] sm:$0xff] %v146
      %v148 = vld [vmem:[%s3] sm:$0xff]
      %v149 = vsub.f32 %v146, %v148
      %v150 = vmul.f32 %v149, %v149
      %s151 = smul.u32 0, 128
      %v152 = vlaneseq
      %v153 = vand.u32 %v152, 127
      %v154 = vstv %s151
      %v155 = vadd.s32 %v154, %v153
      %vm156 = vcmp.lt.s32.totalorder %v155, 16
      %v157 = vsel %vm156, %v150, 0.0
      %158 = vadd.xlane.f32.xlu0 %v157
      %v159 = vpop.xlane.xlu0 %158
      %v160 = vrot.slane %v159, 4
      %v161 = vadd.f32 %v159, %v160
      %v162 = vrot.slane %v161, 2
      %v163 = vadd.f32 %v161, %v162
      %v164 = vrot.slane %v163, 1
      %v165 = vadd.f32 %v163, %v164
      %s166 = vtos %v165
      %s167 = scalar_lea.smem [#allocation5], 0
      %168 = sst [smem:[%s167]] %s166
    $region25: #{linear_mode_forward.1} parent=1 // pred_fallthru
      _
    // Predicated region
    $region26: #{linear_mode_forward.1} parent=1 // pred_check
      _
    $region27: #{linear_mode_forward.1} parent=1 // pred_check_branch
      %170 = sbr.rel (0) target = $region29
    $region28: #{linear_mode_forward.1} parent=1 // pred_region
      %s172 = ssub.s32 128, 128
      %173 = vsyncadd [#allocation3], %s172
      %s175 = sshll.u32 [#allocation2], 4
      %s176 = int_to_ptr.vmem [resolvable:$true] %s175
      %178 = dma.vmem_to_hbm [thread:$0]  %s176, 128, %s4, [#allocation3]
    $region29: #{linear_mode_forward.1} parent=1 // pred_fallthru
      _
    // Predicated region
    $region30: #{linear_mode_forward.1} parent=1 // pred_check
      _
    $region31: #{linear_mode_forward.1} parent=1 // pred_check_branch
      %180 = sbr.rel (0) target = $region33
    $region32: #{linear_mode_forward.1} parent=1 // pred_region
      %s182 = ssub.s32 16, 16
      %183 = vsyncadd [#allocation4], %s182
      %186 = dma.smem_to_hbm [#allocation5], 16, %s5, [#allocation4]
    $region33: #{linear_mode_forward.1} parent=1 // pred_fallthru
      _
    // Predicated region
    $region34: #{linear_mode_forward.1} parent=1 // pred_check
      _
    $region35: #{linear_mode_forward.1} parent=1 // pred_check_branch
      %188 = sbr.rel (0) target = $region37
    $region36: #{linear_mode_forward.1} parent=1 // pred_region
      %189 = dma.done [#allocation3], 128
    $region37: #{linear_mode_forward.1} parent=1 // pred_fallthru
      _
    // Predicated region
    $region38: #{linear_mode_forward.1} parent=1 // pred_check
      _
    $region39: #{linear_mode_forward.1} parent=1 // pred_check_branch
      %191 = sbr.rel (0) target = $region41
    $region40: #{linear_mode_forward.1} parent=1 // pred_region
      %192 = dma.done [#allocation4], 16
    $region41: #{linear_mode_forward.1} parent=1 // pred_fallthru
      _
    %193 = sfence
    %194 = vsyncpa [#allocation3], 1
    %195 = vsyncpa [#allocation4], 1

</llo_original>
